<compile_context>
chip_gen: v7x
topology: tpu7x:2x2x1
jax: 0.10.0
libtpu: 0.0.40
codegen_flags: <defaults>
</compile_context>

<pallas_src>
import functools

import jax
import jax.numpy as jnp
from jax.experimental import pallas as pl
from jax.experimental.pallas import tpu as pltpu


def _round_up(x, m):
    return (x + m - 1) // m * m


def _combined_kernel(x_ref, cell_ref, w1_ref, b1_ref, w2_ref, b2_ref, o_ref):
    # DrugMLP layer 1 (MXU): (blk, d_in) @ (d_in, E), f32 accumulate.
    x = x_ref[...].astype(w1_ref.dtype)
    h = jnp.dot(x, w1_ref[...], preferred_element_type=jnp.float32)
    # Bias + ReLU in f32 on the VPU (no bf16 VALU dependence -> v5e-safe).
    h = jnp.maximum(h + b1_ref[...], 0.0)
    # DrugMLP layer 2 (MXU): (blk, E) @ (E, E), f32 accumulate.
    y = jnp.dot(h.astype(w2_ref.dtype), w2_ref[...],
                preferred_element_type=jnp.float32)
    y = y + b2_ref[...]
    # CombinedModel fusion: (cell_embedding + drug_embedding) * 0.5
    o = (cell_ref[...].astype(jnp.float32) + y) * 0.5
    o_ref[...] = o.astype(o_ref.dtype)


@functools.partial(jax.jit, static_argnames=("block_b", "out_dtype"))
def combined_embedding(drug_vector, cell_embedding, w1, b1, w2, b2, *,
                       block_b=2048, out_dtype=jnp.float32):
    """Fused (cell_embedding + DrugMLP(drug_vector)) * 0.5.

    drug_vector:    (B, input_dim)   float
    cell_embedding: (B, embed_dim)   float (output of the GNN)
    w1: (input_dim, embed_dim)   b1: (1, embed_dim) or (embed_dim,)
    w2: (embed_dim, embed_dim)   b2: (1, embed_dim) or (embed_dim,)

    MXU operand dtype == weight dtype (pass bf16 weights on v6e/v7x via
    prepare_drug_mlp_params); accumulation and bias/ReLU/average math are f32.
    out_dtype controls only the final store (bf16 halves the dominant output
    HBM stream if the downstream head tolerates it).
    """
    B, d_in = drug_vector.shape
    d_in_w, E = w1.shape
    assert d_in_w == d_in
    assert cell_embedding.shape == (B, E)
    assert w2.shape == (E, E)
    b1 = b1.reshape(1, E)
    b2 = b2.reshape(1, E)

    # ---- batch tiling -------------------------------------------------------
    # Tiles are multiples of 8 rows; the tile is derived from the number of grid
    # steps (not the other way around) so ragged batches waste < one sublane
    # group per tile, and we force >= 2 steps when the batch allows it so the
    # "parallel" axis can shard across v7x's two TensorCores (no-op on v5e/v6e).
    sublane = 8
    n_tiles = pl.cdiv(B, block_b)
    if n_tiles == 1 and B >= 2 * sublane:
        n_tiles = 2
    blk = _round_up(pl.cdiv(B, n_tiles), sublane)
    if blk >= B:                      # single full-extent tile (tiny batches)
        blk = B
    grid = (pl.cdiv(B, blk),)

    # ---- cost / VMEM bookkeeping -------------------------------------------
    lane = 128
    w_item = jnp.dtype(w1.dtype).itemsize
    x_item = jnp.dtype(drug_vector.dtype).itemsize
    c_item = jnp.dtype(cell_embedding.dtype).itemsize
    o_item = jnp.dtype(out_dtype).itemsize

    flops = 2 * B * E * (d_in + E) + 4 * B * E
    bytes_accessed = (B * d_in * x_item + B * E * c_item + B * E * o_item
                      + (d_in + E) * E * w_item + 2 * E * 4)

    # Double-buffered streamed tiles (lane-padded VMEM layout) + f32
    # intermediates + resident weights.  Clamped to [32 MiB, 64 MiB]: raises the
    # 16 MiB v5e default for large tiles, never exceeds v7x's 64 MiB physical.
    d_pad = _round_up(d_in, lane)
    e_pad = _round_up(E, lane)
    vmem_needed = (blk * (2 * d_pad * x_item + 2 * e_pad * c_item
                          + 2 * e_pad * o_item + 4 * e_pad * 4)
                   + 2 * (d_pad + e_pad) * e_pad * w_item
                   + 4 * 8 * e_pad * 4)
    vmem_limit = int(min(max(int(vmem_needed * 1.25), 32 * 2 ** 20),
                         64 * 2 ** 20))

    return pl.pallas_call(
        _combined_kernel,
        out_shape=jax.ShapeDtypeStruct((B, E), out_dtype),
        grid_spec=pltpu.PrefetchScalarGridSpec(
            num_scalar_prefetch=0,
            grid=grid,
            in_specs=[
                # Streamed over the batch; last dim == full array extent.
                pl.BlockSpec((blk, d_in), lambda i: (i, 0)),
                pl.BlockSpec((blk, E), lambda i: (i, 0)),
                # Weights / biases: constant block index -> VMEM-resident.
                pl.BlockSpec((d_in, E), lambda i: (0, 0)),
                pl.BlockSpec((1, E), lambda i: (0, 0)),
                pl.BlockSpec((E, E), lambda i: (0, 0)),
                pl.BlockSpec((1, E), lambda i: (0, 0)),
            ],
            out_specs=pl.BlockSpec((blk, E), lambda i: (i, 0)),
        ),
        compiler_params=pltpu.CompilerParams(
            dimension_semantics=("parallel",),
            vmem_limit_bytes=vmem_limit,
        ),
        cost_estimate=pl.CostEstimate(
            flops=flops, transcendentals=0, bytes_accessed=bytes_accessed),
    )(drug_vector, cell_embedding, w1, b1, w2, b2)


def prepare_drug_mlp_params(w1, b1, w2, b2, *, compute_dtype=jnp.float32):
    """One-time conversion to kernel layout (hoisted out of the per-call path):
    weights (in, out) cast to the MXU operand dtype, biases (1, out) in f32.
    For PyTorch nn.Linear weights (out, in), pass W.T."""
    return (jnp.asarray(w1, compute_dtype),
            jnp.asarray(b1, jnp.float32).reshape(1, -1),
            jnp.asarray(w2, compute_dtype),
            jnp.asarray(b2, jnp.float32).reshape(1, -1))


def init_drug_mlp_params(key, input_dim, embed_dim=44, dtype=jnp.float32):
    """nn.Linear-style init (uniform +/- 1/sqrt(fan_in)); weights stored (in, out)."""
    k1, k2, k3, k4 = jax.random.split(key, 4)
    bound1 = 1.0 / jnp.sqrt(input_dim)
    bound2 = 1.0 / jnp.sqrt(embed_dim)
    w1 = jax.random.uniform(k1, (input_dim, embed_dim), dtype, -bound1, bound1)
    b1 = jax.random.uniform(k2, (1, embed_dim), dtype, -bound1, bound1)
    w2 = jax.random.uniform(k3, (embed_dim, embed_dim), dtype, -bound2, bound2)
    b2 = jax.random.uniform(k4, (1, embed_dim), dtype, -bound2, bound2)
    return w1, b1, w2, b2


if __name__ == "__main__":
    key = jax.random.PRNGKey(0)
    k_x, k_c, k_p = jax.random.split(key, 3)

    input_dim, embed_dim = 32, 44
    w1, b1, w2, b2 = init_drug_mlp_params(k_p, input_dim, embed_dim)

    # --- Small f32 case (single tile): must match PyTorch-f32 semantics. -----
    batch = 8
    x = jax.random.normal(k_x, (batch, input_dim), dtype=jnp.float32)
    cell = jax.random.normal(k_c, (batch, embed_dim), dtype=jnp.float32)

    out = jax.block_until_ready(combined_embedding(x, cell, w1, b1, w2, b2))
    drug_ref = jnp.maximum(x @ w1 + b1, 0.0) @ w2 + b2
    ref = (cell + drug_ref) * 0.5
    assert out.shape == (batch, embed_dim)
    assert jnp.allclose(out, ref, atol=1e-5, rtol=1e-5), "f32 mismatch vs reference"

    # --- Ragged multi-tile batch: exercises the masked boundary block (no
    #     wrapper-side batch padding) and the >=2-step grid. --------------------
    batch2 = 100  # not a multiple of the tile
    x2 = jax.random.normal(k_x, (batch2, input_dim), dtype=jnp.float32)
    cell2 = jax.random.normal(k_c, (batch2, embed_dim), dtype=jnp.float32)

    out2 = jax.block_until_ready(
        combined_embedding(x2, cell2, w1, b1, w2, b2, block_b=48))
    drug_ref2 = jnp.maximum(x2 @ w1 + b1, 0.0) @ w2 + b2
    ref2 = (cell2 + drug_ref2) * 0.5
    assert out2.shape == (batch2, embed_dim)
    assert jnp.allclose(out2, ref2, atol=1e-5, rtol=1e-5), "ragged f32 mismatch"

    # --- bf16-operand path (v6e/v7x MXU); params prepared once at init. ------
    w1b, b1b, w2b, b2b = prepare_drug_mlp_params(
        w1, b1, w2, b2, compute_dtype=jnp.bfloat16)
    out3 = jax.block_until_ready(
        combined_embedding(x2, cell2, w1b, b1b, w2b, b2b, block_b=48))
    h3 = jnp.maximum(
        jnp.dot(x2.astype(jnp.bfloat16), w1b,
                preferred_element_type=jnp.float32) + b1b, 0.0)
    y3 = jnp.dot(h3.astype(jnp.bfloat16), w2b,
                 preferred_element_type=jnp.float32) + b2b
    ref3 = (cell2 + y3) * 0.5
    assert out3.shape == (batch2, embed_dim)
    assert jnp.allclose(out3, ref3, atol=1e-2, rtol=1e-2), "bf16 mismatch vs reference"

    print("KERNEL_OK")
</pallas_src>

<mosaic_0001>
module attributes {stable_mosaic.version = 11 : i64} {
  func.func @_combined_kernel(%arg0: i32, %arg1: memref<8x32xf32, #tpu.memory_space<vmem>>, %arg2: memref<8x44xf32, #tpu.memory_space<vmem>>, %arg3: memref<32x44xf32, #tpu.memory_space<vmem>>, %arg4: memref<1x44xf32, #tpu.memory_space<vmem>>, %arg5: memref<44x44xf32, #tpu.memory_space<vmem>>, %arg6: memref<1x44xf32, #tpu.memory_space<vmem>>, %arg7: memref<8x44xf32, #tpu.memory_space<vmem>>) attributes {dimension_semantics = [#tpu.dimension_semantics<parallel>], iteration_bounds = array<i64: 1>, scalar_prefetch = 0 : i64, scratch_operands = 0 : i64, tpu.core_type = #tpu.core_type<tc>, window_params = [{transform_indices = @transform_0, window_bounds = array<i64: 8, 32>}, {transform_indices = @transform_1, window_bounds = array<i64: 8, 44>}, {pipeline_mode = #tpu.pipeline_mode<synchronous>, transform_indices = @transform_2, window_bounds = array<i64: 32, 44>}, {pipeline_mode = #tpu.pipeline_mode<synchronous>, transform_indices = @transform_3, window_bounds = array<i64: 1, 44>}, {pipeline_mode = #tpu.pipeline_mode<synchronous>, transform_indices = @transform_4, window_bounds = array<i64: 44, 44>}, {pipeline_mode = #tpu.pipeline_mode<synchronous>, transform_indices = @transform_5, window_bounds = array<i64: 1, 44>}, {transform_indices = @transform_6, window_bounds = array<i64: 8, 44>}]} {
    %c0 = arith.constant 0 : index
    %c0_0 = arith.constant 0 : index
    %0 = vector.load %arg1[%c0, %c0_0] : memref<8x32xf32, #tpu.memory_space<vmem>>, vector<8x32xf32>
    %c0_1 = arith.constant 0 : index
    %c0_2 = arith.constant 0 : index
    %1 = vector.load %arg3[%c0_1, %c0_2] : memref<32x44xf32, #tpu.memory_space<vmem>>, vector<32x44xf32>
    %cst = arith.constant dense<0.000000e+00> : vector<8x44xf32>
    %2 = tpu.matmul %0, %1, %cst {dimension_numbers = #tpu.dot_dimension_numbers<[1], [0], [0], [1], [0, 0, 1, 1], [], []>} : vector<8x32xf32>, vector<32x44xf32>, vector<8x44xf32> -> vector<8x44xf32>
    %c0_3 = arith.constant 0 : index
    %c0_4 = arith.constant 0 : index
    %3 = vector.load %arg4[%c0_3, %c0_4] : memref<1x44xf32, #tpu.memory_space<vmem>>, vector<1x44xf32>
    %4 = vector.broadcast %3 : vector<1x44xf32> to vector<8x44xf32>
    %5 = arith.addf %2, %4 : vector<8x44xf32>
    %cst_5 = arith.constant 0.000000e+00 : f32
    %6 = vector.broadcast %cst_5 : f32 to vector<8x44xf32>
    %7 = arith.maximumf %5, %6 : vector<8x44xf32>
    %c0_6 = arith.constant 0 : index
    %c0_7 = arith.constant 0 : index
    %8 = vector.load %arg5[%c0_6, %c0_7] : memref<44x44xf32, #tpu.memory_space<vmem>>, vector<44x44xf32>
    %cst_8 = arith.constant dense<0.000000e+00> : vector<8x44xf32>
    %9 = tpu.matmul %7, %8, %cst_8 {dimension_numbers = #tpu.dot_dimension_numbers<[1], [0], [0], [1], [0, 0, 1, 1], [], []>} : vector<8x44xf32>, vector<44x44xf32>, vector<8x44xf32> -> vector<8x44xf32>
    %c0_9 = arith.constant 0 : index
    %c0_10 = arith.constant 0 : index
    %10 = vector.load %arg6[%c0_9, %c0_10] : memref<1x44xf32, #tpu.memory_space<vmem>>, vector<1x44xf32>
    %11 = vector.broadcast %10 : vector<1x44xf32> to vector<8x44xf32>
    %12 = arith.addf %9, %11 : vector<8x44xf32>
    %c0_11 = arith.constant 0 : index
    %c0_12 = arith.constant 0 : index
    %13 = vector.load %arg2[%c0_11, %c0_12] : memref<8x44xf32, #tpu.memory_space<vmem>>, vector<8x44xf32>
    %14 = arith.addf %13, %12 : vector<8x44xf32>
    %cst_13 = arith.constant 5.000000e-01 : f32
    %15 = vector.broadcast %cst_13 : f32 to vector<8x44xf32>
    %16 = arith.mulf %14, %15 : vector<8x44xf32>
    %c0_14 = arith.constant 0 : index
    %c0_15 = arith.constant 0 : index
    %17 = vector.load %arg7[%c0_14, %c0_15] : memref<8x44xf32, #tpu.memory_space<vmem>>, vector<8x44xf32>
    tpu.vector_store %arg7[%c0_14, %c0_15], %16 {strides = array<i32>} : memref<8x44xf32, #tpu.memory_space<vmem>>, vector<8x44xf32>,
    return
  }
  func.func @transform_0(%arg0: i32) -> (i32, i32) {
    %c0_i32 = arith.constant 0 : i32
    %c0_i32_0 = arith.constant 0 : i32
    return %arg0, %c0_i32 : i32, i32
  }
  func.func @transform_1(%arg0: i32) -> (i32, i32) {
    %c0_i32 = arith.constant 0 : i32
    %c0_i32_0 = arith.constant 0 : i32
    return %arg0, %c0_i32 : i32, i32
  }
  func.func @transform_2(%arg0: i32) -> (i32, i32) {
    %c0_i32 = arith.constant 0 : i32
    %c0_i32_0 = arith.constant 0 : i32
    %c0_i32_1 = arith.constant 0 : i32
    return %c0_i32, %c0_i32_0 : i32, i32
  }
  func.func @transform_3(%arg0: i32) -> (i32, i32) {
    %c0_i32 = arith.constant 0 : i32
    %c0_i32_0 = arith.constant 0 : i32
    %c0_i32_1 = arith.constant 0 : i32
    return %c0_i32, %c0_i32_0 : i32, i32
  }
  func.func @transform_4(%arg0: i32) -> (i32, i32) {
    %c0_i32 = arith.constant 0 : i32
    %c0_i32_0 = arith.constant 0 : i32
    %c0_i32_1 = arith.constant 0 : i32
    return %c0_i32, %c0_i32_0 : i32, i32
  }
  func.func @transform_5(%arg0: i32) -> (i32, i32) {
    %c0_i32 = arith.constant 0 : i32
    %c0_i32_0 = arith.constant 0 : i32
    %c0_i32_1 = arith.constant 0 : i32
    return %c0_i32, %c0_i32_0 : i32, i32
  }
  func.func @transform_6(%arg0: i32) -> (i32, i32) {
    %c0_i32 = arith.constant 0 : i32
    %c0_i32_0 = arith.constant 0 : i32
    return %arg0, %c0_i32 : i32, i32
  }
}

</mosaic_0001>

<llo_original>
// kernel: combined_embedding.1
$region0: #{combined_embedding.1}
  #allocation0 [shape = 'u32[]', space=smem, size = 0x4, offset = 0x4, fixed_abs, tag = 'smem constant byte address 0x4 - core index']
  #allocation1 [shape = 'u32[144,128]{1,0:T(1,128)}', space=vmem, size = 0x12000, scoped, tag = 'internal scratch']
  %s0 = inlined_call_operand.hbm [shape: f32[8,32], index: 0, kind: input, shape index: {}]
  %s1 = inlined_call_operand.hbm [shape: f32[8,44], index: 1, kind: input, shape index: {}]
  %s2 = inlined_call_operand.hbm [shape: f32[32,44], index: 2, kind: input, shape index: {}]
  %s3 = inlined_call_operand.vmem [shape: f32[1,44], index: 3, kind: input, shape index: {}]
  %s4 = inlined_call_operand.hbm [shape: f32[44,44], index: 4, kind: input, shape index: {}]
  %s5 = inlined_call_operand.vmem [shape: f32[1,44], index: 5, kind: input, shape index: {}]
  %s6 = inlined_call_operand.hbm [shape: f32[8,44], index: 6, kind: output, shape index: {}]
  %s7 = sld [smem:[#allocation0]]
  $region50: #{combined_embedding.1} parent=0
    _
  %s9 = ssub.s32 1, %s7
  %s10 = scalar_select 0, %s9, %s7
  $region1: #{combined_embedding.1} parent=0
    #allocation2 [shape = 'u8[4096]{0}', space=vmem, size = 0x1000, scoped, tag = 'input window, operand 0, single buffered']
    #allocation3 [shape = 's32[1]{0}', space=sflag, size = 0x4, scoped, tag = 'scoped memory for combined_embedding.1']
    #allocation4 [shape = 's32[1]{0}', space=sflag, size = 0x4, scoped, tag = 'scoped memory for combined_embedding.1']
    #allocation5 [shape = 'u8[4096]{0}', space=vmem, size = 0x1000, scoped, tag = 'input window, operand 1, single buffered']
    #allocation6 [shape = 's32[1]{0}', space=sflag, size = 0x4, scoped, tag = 'scoped memory for combined_embedding.1']
    #allocation7 [shape = 'u8[16384]{0}', space=vmem, size = 0x4000, scoped, tag = 'input window, operand 2, single buffered']
    #allocation8 [shape = 'u8[24576]{0}', space=vmem, size = 0x6000, scoped, tag = 'input window, operand 4, single buffered']
    #allocation9 [shape = 's32[1]{0}', space=sflag, size = 0x4, scoped, tag = 'scoped memory for combined_embedding.1']
    #allocation10 [shape = 'u8[4096]{0}', space=vmem, size = 0x1000, scoped, tag = 'output window, operand 0, single buffered']
    %11 = vsyncpa [#allocation3], 0
    %12 = vsyncpa [#allocation6], 0
    %13 = vsyncpa [#allocation9], 0
    %14 = vsyncpa [#allocation4], 0
    // Predicated region
    $region2: #{combined_embedding.1} parent=1 // pred_check
      _
    $region3: #{combined_embedding.1} parent=1 // pred_check_branch
      %16 = sbr.rel (0) target = $region5
    $region4: #{combined_embedding.1} parent=1 // pred_region
      %s18 = ssub.s32 128, 128
      %19 = vsyncadd [#allocation3], %s18
      %s21 = sshll.u32 [#allocation2], 4
      %s22 = int_to_ptr.vmem [resolvable:$true] %s21
      %24 = dma.hbm_to_vmem [thread:$0]  %s0, 128, %s22, [#allocation3]
    $region5: #{combined_embedding.1} parent=1 // pred_fallthru
      _
    // Predicated region
    $region6: #{combined_embedding.1} parent=1 // pred_check
      _
    $region7: #{combined_embedding.1} parent=1 // pred_check_branch
      %26 = sbr.rel (0) target = $region9
    $region8: #{combined_embedding.1} parent=1 // pred_region
      %s28 = ssub.s32 128, 128
      %29 = vsyncadd [#allocation6], %s28
      %s31 = sshll.u32 [#allocation5], 4
      %s32 = int_to_ptr.vmem [resolvable:$true] %s31
      %34 = dma.hbm_to_vmem [thread:$0]  %s1, 128, %s32, [#allocation6]
    $region9: #{combined_embedding.1} parent=1 // pred_fallthru
      _
    // Predicated region
    $region10: #{combined_embedding.1} parent=1 // pred_check
      _
    $region11: #{combined_embedding.1} parent=1 // pred_check_branch
      %36 = sbr.rel (0) target = $region13
    $region12: #{combined_embedding.1} parent=1 // pred_region
      %s38 = ssub.s32 512, 512
      %39 = vsyncadd [#allocation6], %s38
      %s40 = sshll.u32 [#allocation7], 4
      %s41 = int_to_ptr.vmem [resolvable:$true] %s40
      %46 = dma.hbm_to_vmem [thread:$0]  %s2, 512, %s41, [#allocation6], 128, 128, 8
    $region13: #{combined_embedding.1} parent=1 // pred_fallthru
      _
    // Predicated region
    $region14: #{combined_embedding.1} parent=1 // pred_check
      _
    $region15: #{combined_embedding.1} parent=1 // pred_check_branch
      %48 = sbr.rel (0) target = $region17
    $region16: #{combined_embedding.1} parent=1 // pred_region
      _
    $region17: #{combined_embedding.1} parent=1 // pred_fallthru
      _
    // Predicated region
    $region18: #{combined_embedding.1} parent=1 // pred_check
      _
    $region19: #{combined_embedding.1} parent=1 // pred_check_branch
      %50 = sbr.rel (0) target = $region21
    $region20: #{combined_embedding.1} parent=1 // pred_region
      %s52 = ssub.s32 768, 768
      %53 = vsyncadd [#allocation9], %s52
      %s54 = sshll.u32 [#allocation8], 4
      %s55 = int_to_ptr.vmem [resolvable:$true] %s54
      %60 = dma.hbm_to_vmem [thread:$0]  %s4, 768, %s55, [#allocation9], 128, 128, 8
    $region21: #{combined_embedding.1} parent=1 // pred_fallthru
      _
    // Predicated region
    $region22: #{combined_embedding.1} parent=1 // pred_check
      _
    $region23: #{combined_embedding.1} parent=1 // pred_check_branch
      %62 = sbr.rel (0) target = $region25
    $region24: #{combined_embedding.1} parent=1 // pred_region
      _
    $region25: #{combined_embedding.1} parent=1 // pred_fallthru
      _
    // Predicated region
    $region26: #{combined_embedding.1} parent=1 // pred_check
      _
    $region27: #{combined_embedding.1} parent=1 // pred_check_branch
      %64 = sbr.rel (0) target = $region29
    $region28: #{combined_embedding.1} parent=1 // pred_region
      %65 = dma.done [#allocation3], 128
    $region29: #{combined_embedding.1} parent=1 // pred_fallthru
      _
    // Predicated region
    $region30: #{combined_embedding.1} parent=1 // pred_check
      _
    $region31: #{combined_embedding.1} parent=1 // pred_check_branch
      %67 = sbr.rel (0) target = $region33
    $region32: #{combined_embedding.1} parent=1 // pred_region
      %68 = dma.done [#allocation6], 128
    $region33: #{combined_embedding.1} parent=1 // pred_fallthru
      _
    // Predicated region
    $region34: #{combined_embedding.1} parent=1 // pred_check
      _
    $region35: #{combined_embedding.1} parent=1 // pred_check_branch
      %70 = sbr.rel (0) target = $region37
    $region36: #{combined_embedding.1} parent=1 // pred_region
      %71 = dma.done [#allocation6], 512
    $region37: #{combined_embedding.1} parent=1 // pred_fallthru
      _
    // Predicated region
    $region38: #{combined_embedding.1} parent=1 // pred_check
      _
    $region39: #{combined_embedding.1} parent=1 // pred_check_branch
      %73 = sbr.rel (0) target = $region41
    $region40: #{combined_embedding.1} parent=1 // pred_region
      %74 = dma.done [#allocation9], 768
    $region41: #{combined_embedding.1} parent=1 // pred_fallthru
      _
    %v75 = vld [vmem:[#allocation2] sm:$0xff]
    %v76 = vld [vmem:[#allocation7] sm:$0xff]
    %v77 = vld [vmem:[#allocation7 + $0x8] sm:$0xff]
    %v78 = vld [vmem:[#allocation7 + $0x10] sm:$0xff]
    %v79 = vld [vmem:[#allocation7 + $0x18] sm:$0xff]
    %v80 = vld [vmem:[%s3] sm:$0x1]
    %v82 = vlaneseq
    %v83 = vshrl.u32 %v82, 7
    %v84 = vsub.s32 0, %v83
    %v85 = vrot.slane %v80, %v84
    %vm87 = vcmask 261120
    %v89 = vsel %vm87, %v75, 0
    %91 = vmatprep.subr.mxu0 0.0
    %92 = vmatpush1.msra.mxu0 %v76
    %93 = vmatprep.subr.mxu0 0.0
    %94 = vmatpush1.msra.mxu0 %v77
    %95 = vmatprep.subr.mxu0 0.0
    %96 = vmatpush1.msra.mxu0 %v78
    %97 = vmatprep.subr.mxu0 0.0
    %98 = vmatpush1.msra.mxu0 %v79
    %99 = vmatprep.subr.mxu0 0.0
    %100 = vmatpush1.msra.mxu0 0.0
    %101 = vmatprep.subr.mxu0 0.0
    %102 = vmatpush1.msra.mxu0 0.0
    %103 = vmatprep.subr.mxu0 0.0
    %104 = vmatpush1.msra.mxu0 0.0
    %105 = vmatprep.subr.mxu0 0.0
    %106 = vmatpush1.msra.mxu0 0.0
    %107 = vmatprep.subr.mxu0 0.0
    %108 = vmatpush1.msra.mxu0 0.0
    %109 = vmatprep.subr.mxu0 0.0
    %110 = vmatpush1.msra.mxu0 0.0
    %111 = vmatprep.subr.mxu0 0.0
    %112 = vmatpush1.msra.mxu0 0.0
    %113 = vmatprep.subr.mxu0 0.0
    %114 = vmatpush1.msra.mxu0 0.0
    %115 = vmatprep.subr.mxu0 0.0
    %116 = vmatpush1.msra.mxu0 0.0
    %117 = vmatprep.subr.mxu0 0.0
    %118 = vmatpush1.msra.mxu0 0.0
    %119 = vmatprep.subr.mxu0 0.0
    %120 = vmatpush1.msra.mxu0 0.0
    %121 = vmatprep.subr.mxu0 0.0
    %122 = vmatpush1.msra.mxu0 0.0
    %123 = vmatprep.subr.mxu0 0.0
    %124 = vmatpush1.msra.mxu0 0.0
    %125 = vmatprep.subr.mxu0 0.0
    %126 = vmatpush1.msra.mxu0 0.0
    %127 = vmatprep.subr.mxu0 0.0
    %128 = vmatpush1.msra.mxu0 0.0
    %129 = vmatprep.subr.mxu0 0.0
    %130 = vmatpush1.msra.mxu0 0.0
    %131 = vmatprep.subr.mxu0 0.0
    %132 = vmatpush1.msra.mxu0 0.0
    %133 = vmatprep.subr.mxu0 0.0
    %134 = vmatpush1.msra.mxu0 0.0
    %135 = vmatprep.subr.mxu0 0.0
    %136 = vmatpush1.msra.mxu0 0.0
    %137 = vmatprep.subr.mxu0 0.0
    %138 = vmatpush1.msra.mxu0 0.0
    %139 = vmatprep.subr.mxu0 0.0
    %140 = vmatpush1.msra.mxu0 0.0
    %141 = vmatprep.subr.mxu0 0.0
    %142 = vmatpush1.msra.mxu0 0.0
    %143 = vmatprep.subr.mxu0 0.0
    %144 = vmatpush1.msra.mxu0 0.0
    %145 = vmatprep.subr.mxu0 0.0
    %146 = vmatpush1.msra.mxu0 0.0
    %147 = vmatprep.subr.mxu0 0.0
    %148 = vmatpush1.msra.mxu0 0.0
    %149 = vmatprep.subr.mxu0 0.0
    %150 = vmatpush1.msra.mxu0 0.0
    %151 = vmatprep.subr.mxu0 0.0
    %152 = vmatpush1.msra.mxu0 0.0
    %153 = vmatprep.subr.mxu0 0.0
    %154 = vmatpush1.msra.mxu0 0.0
    %155 = vmatprep.mubr.f32.mxu0 0.0
    %156 = vmatmul.mubr.f32.gmra.mrb[0].mxu0 %v89
    %v157 = vpop.f32.mrb[0].mxu0
    %v158 = vadd.f32 %v85, %v157
    %v159 = vpop.f32.mrb[0].mxu0
    %160 = vdwg.mxu0
    %v161 = vmax.f32 %v158, 0.0
    %v162 = vld [vmem:[#allocation8] sm:$0xff]
    %v163 = vld [vmem:[#allocation8 + $0x8] sm:$0xff]
    %v164 = vld [vmem:[#allocation8 + $0x10] sm:$0xff]
    %v165 = vld [vmem:[#allocation8 + $0x18] sm:$0xff]
    %v166 = vld [vmem:[#allocation8 + $0x20] sm:$0xff]
    %v167 = vld [vmem:[#allocation8 + $0x28] sm:$0xf]
    %v168 = vld [vmem:[%s5] sm:$0x1]
    %v170 = vlaneseq
    %v171 = vshrl.u32 %v170, 7
    %v172 = vsub.s32 0, %v171
    %v173 = vrot.slane %v168, %v172
    %vm175 = vcmask 359424
    %v177 = vsel %vm175, %v161, 0
    %vm179 = vcmask 1043456
    %v181 = vsel %vm179, %v167, 0
    %183 = vmatprep.subr.mxu0 0.0
    %184 = vmatpush1.msra.mxu0 %v162
    %185 = vmatprep.subr.mxu0 0.0
    %186 = vmatpush1.msra.mxu0 %v163
    %187 = vmatprep.subr.mxu0 0.0
    %188 = vmatpush1.msra.mxu0 %v164
    %189 = vmatprep.subr.mxu0 0.0
    %190 = vmatpush1.msra.mxu0 %v165
    %191 = vmatprep.subr.mxu0 0.0
    %192 = vmatpush1.msra.mxu0 %v166
    %193 = vmatprep.subr.mxu0 0.0
    %194 = vmatpush1.msra.mxu0 %v181
    %195 = vmatprep.subr.mxu0 0.0
    %196 = vmatpush1.msra.mxu0 0.0
    %197 = vmatprep.subr.mxu0 0.0
    %198 = vmatpush1.msra.mxu0 0.0
    %199 = vmatprep.subr.mxu0 0.0
    %200 = vmatpush1.msra.mxu0 0.0
    %201 = vmatprep.subr.mxu0 0.0
    %202 = vmatpush1.msra.mxu0 0.0
    %203 = vmatprep.subr.mxu0 0.0
    %204 = vmatpush1.msra.mxu0 0.0
    %205 = vmatprep.subr.mxu0 0.0
    %206 = vmatpush1.msra.mxu0 0.0
    %207 = vmatprep.subr.mxu0 0.0
    %208 = vmatpush1.msra.mxu0 0.0
    %209 = vmatprep.subr.mxu0 0.0
    %210 = vmatpush1.msra.mxu0 0.0
    %211 = vmatprep.subr.mxu0 0.0
    %212 = vmatpush1.msra.mxu0 0.0
    %213 = vmatprep.subr.mxu0 0.0
    %214 = vmatpush1.msra.mxu0 0.0
    %215 = vmatprep.subr.mxu0 0.0
    %216 = vmatpush1.msra.mxu0 0.0
    %217 = vmatprep.subr.mxu0 0.0
    %218 = vmatpush1.msra.mxu0 0.0
    %219 = vmatprep.subr.mxu0 0.0
    %220 = vmatpush1.msra.mxu0 0.0
    %221 = vmatprep.subr.mxu0 0.0
    %222 = vmatpush1.msra.mxu0 0.0
    %223 = vmatprep.subr.mxu0 0.0
    %224 = vmatpush1.msra.mxu0 0.0
    %225 = vmatprep.subr.mxu0 0.0
    %226 = vmatpush1.msra.mxu0 0.0
    %227 = vmatprep.subr.mxu0 0.0
    %228 = vmatpush1.msra.mxu0 0.0
    %229 = vmatprep.subr.mxu0 0.0
    %230 = vmatpush1.msra.mxu0 0.0
    %231 = vmatprep.subr.mxu0 0.0
    %232 = vmatpush1.msra.mxu0 0.0
    %233 = vmatprep.subr.mxu0 0.0
    %234 = vmatpush1.msra.mxu0 0.0
    %235 = vmatprep.subr.mxu0 0.0
    %236 = vmatpush1.msra.mxu0 0.0
    %237 = vmatprep.subr.mxu0 0.0
    %238 = vmatpush1.msra.mxu0 0.0
    %239 = vmatprep.subr.mxu0 0.0
    %240 = vmatpush1.msra.mxu0 0.0
    %241 = vmatprep.subr.mxu0 0.0
    %242 = vmatpush1.msra.mxu0 0.0
    %243 = vmatprep.subr.mxu0 0.0
    %244 = vmatpush1.msra.mxu0 0.0
    %245 = vmatprep.subr.mxu0 0.0
    %246 = vmatpush1.msra.mxu0 0.0
    %247 = vmatprep.mubr.f32.mxu0 0.0
    %248 = vmatmul.mubr.f32.gmra.mrb[0].mxu0 %v177
    %v249 = vpop.f32.mrb[0].mxu0
    %v250 = vadd.f32 %v173, %v249
    %v251 = vpop.f32.mrb[0].mxu0
    %252 = vdwg.mxu0
    %v253 = vld [vmem:[#allocation5] sm:$0xff]
    %v254 = vadd.f32 %v253, %v250
    %v255 = vmul.f32 %v254, 0.5
    %256 = vst.msk [vmem:[#allocation10] sm:$0xff] %vm175, %v255
    // Predicated region
    $region42: #{combined_embedding.1} parent=1 // pred_check
      _
    $region43: #{combined_embedding.1} parent=1 // pred_check_branch
      %258 = sbr.rel (0) target = $region45
    $region44: #{combined_embedding.1} parent=1 // pred_region
      %s260 = ssub.s32 128, 128
      %261 = vsyncadd [#allocation4], %s260
      %s263 = sshll.u32 [#allocation10], 4
      %s264 = int_to_ptr.vmem [resolvable:$true] %s263
      %266 = dma.vmem_to_hbm [thread:$0]  %s264, 128, %s6, [#allocation4]
    $region45: #{combined_embedding.1} parent=1 // pred_fallthru
      _
    // Predicated region
    $region46: #{combined_embedding.1} parent=1 // pred_check
      _
    $region47: #{combined_embedding.1} parent=1 // pred_check_branch
      %268 = sbr.rel (0) target = $region49
    $region48: #{combined_embedding.1} parent=1 // pred_region
      %269 = dma.done [#allocation4], 128
    $region49: #{combined_embedding.1} parent=1 // pred_fallthru
      _
    %270 = vsyncpa [#allocation3], 1
    %271 = vsyncpa [#allocation6], 1
    %272 = vsyncpa [#allocation9], 1
    %273 = vsyncpa [#allocation4], 1

</llo_original>
